<compile_context>
chip_gen: v6e
topology: v6e:2x2x1
jax: 0.10.0
libtpu: 0.0.40
codegen_flags: <defaults>
</compile_context>

<pallas_src>
import functools

import jax
import jax.numpy as jnp
from jax.experimental import pallas as pl
from jax.experimental.pallas import tpu as pltpu


def dnn_kernel(x_ref, w1_ref, b1_ref, w2_ref, b2_ref, w3_ref, b3_ref, o_ref,
               *, sub_m):
    tm = x_ref.shape[0]

    # Resident blocks: loaded once per grid step (constant index_maps).
    w1 = w1_ref[...]
    w2 = w2_ref[...]
    w3 = w3_ref[...]
    b1 = b1_ref[...]          # (1, hidden) f32 — broadcast happens at the add
    b2 = b2_ref[...]
    b3 = b3_ref[...]

    n_sub = tm // sub_m       # static; independent sub-chains, fully unrolled
    for c in range(n_sub):
        r0 = c * sub_m        # static, 128-aligned offset
        x = x_ref[pl.ds(r0, sub_m), :]

        # fc_1 (f32 accumulation on the MXU)
        h = jnp.dot(x, w1, preferred_element_type=jnp.float32) + b1

        # fc_2 applied 6 times with the same weights; ReLU/bias in f32,
        # cast back to the weight dtype only for the next dot's LHS.
        for _ in range(6):
            a = jnp.maximum(h, 0.0).astype(w2.dtype)
            h = jnp.dot(a, w2, preferred_element_type=jnp.float32) + b2

        # fc_3
        a = jnp.maximum(h, 0.0).astype(w3.dtype)
        y = jnp.dot(a, w3, preferred_element_type=jnp.float32) + b3

        # dropout: identity (eval mode). Batch-major store, no wrapper transpose.
        o_ref[pl.ds(r0, sub_m), :] = y.astype(o_ref.dtype)


def _round_up(a, b):
    return pl.cdiv(a, b) * b


def dnn_forward(x, params, *, compute_dtype=jnp.bfloat16, block_m=1024, sub_m=256):
    """x: [B, input_size] float32. params: dict of f32 weights/biases.

    Weights are stored as [in, out] (transpose of PyTorch's [out, in]); biases as
    [1, out]. Returns [B, output_size] float32.
    """
    w1, b1 = params["w1"], params["b1"]
    w2, b2 = params["w2"], params["b2"]
    w3, b3 = params["w3"], params["b3"]

    B, in_size = x.shape
    hidden = w1.shape[1]
    out_size = w3.shape[1]

    assert block_m % 128 == 0 and sub_m % 128 == 0

    # --- batch tile selection -------------------------------------------------
    # Round the batch to a multiple of 128 (aligned tiles, enables sub-slicing).
    # Use >= 2 grid steps once the batch exceeds 256 rows so both v7x
    # TensorCores get work; cap each tile at block_m rows.
    b128 = _round_up(B, 128)
    min_tiles = 2 if b128 > 256 else 1
    n_tiles = max(min_tiles, pl.cdiv(b128, block_m))
    tm = pl.cdiv(b128 // 128, n_tiles) * 128       # rows per tile, multiple of 128
    b_pad = n_tiles * tm
    sub = sub_m if tm % sub_m == 0 else 128        # in-kernel sub-slice rows

    xp = x if b_pad == B else jnp.pad(x, ((0, b_pad - B), (0, 0)))
    xp = xp.astype(compute_dtype)
    w1c = w1.astype(compute_dtype)
    w2c = w2.astype(compute_dtype)
    w3c = w3.astype(compute_dtype)
    # Biases stay f32: they are added to the f32 accumulator.

    grid = (b_pad // tm,)
    resident = lambda shape: pl.BlockSpec(shape, lambda i: (0, 0))

    # --- VMEM budget check (double-buffered, (8,128)-padded tiles) -------------
    isz = jnp.dtype(compute_dtype).itemsize
    tile_bytes = lambda r, c, n: _round_up(r, 8) * _round_up(c, 128) * n
    vmem_need = 2 * (
        tile_bytes(tm, in_size, isz)        # streamed x
        + tile_bytes(tm, out_size, 4)       # streamed out (f32)
        + tile_bytes(in_size, hidden, isz)  # w1
        + tile_bytes(hidden, hidden, isz)   # w2
        + tile_bytes(hidden, out_size, isz) # w3
        + 2 * tile_bytes(1, hidden, 4)      # b1, b2
        + tile_bytes(1, out_size, 4)        # b3
    )
    vmem_limit = None
    if 2 * vmem_need + (4 << 20) > (16 << 20):     # beyond the v5e scoped default
        vmem_limit = min(64 << 20, 2 * vmem_need + (8 << 20))

    # --- cost estimate so XLA overlaps the surrounding pad/cast ops ------------
    flops = 2 * b_pad * (in_size * hidden + 6 * hidden * hidden + hidden * out_size)
    bytes_accessed = (
        xp.size * xp.dtype.itemsize
        + sum(int(a.size) * a.dtype.itemsize for a in (w1c, b1, w2c, b2, w3c, b3))
        + b_pad * out_size * 4
    )
    cost = pl.CostEstimate(flops=flops, transcendentals=0,
                           bytes_accessed=bytes_accessed)

    out = pl.pallas_call(
        functools.partial(dnn_kernel, sub_m=sub),
        out_shape=jax.ShapeDtypeStruct((b_pad, out_size), jnp.float32),
        grid_spec=pl.GridSpec(
            grid=grid,
            in_specs=[
                pl.BlockSpec((tm, in_size), lambda i: (i, 0)),   # streamed x tile
                resident((in_size, hidden)),                     # w1
                resident((1, hidden)),                           # b1
                resident((hidden, hidden)),                      # w2
                resident((1, hidden)),                           # b2
                resident((hidden, out_size)),                    # w3
                resident((1, out_size)),                         # b3
            ],
            out_specs=pl.BlockSpec((tm, out_size), lambda i: (i, 0)),
        ),
        compiler_params=pltpu.CompilerParams(
            dimension_semantics=("parallel",),
            vmem_limit_bytes=vmem_limit,
        ),
        cost_estimate=cost,
    )(xp, w1c, b1, w2c, b2, w3c, b3)

    return out[:B] if b_pad != B else out


def init_params(key, input_size, hidden_size, output_size):
    """Deterministic init mimicking nn.Linear (uniform +/- 1/sqrt(fan_in))."""
    def linear(k, fan_in, fan_out):
        kw, kb = jax.random.split(k)
        bound = 1.0 / jnp.sqrt(fan_in)
        w = jax.random.uniform(kw, (fan_in, fan_out), jnp.float32, -bound, bound)
        b = jax.random.uniform(kb, (1, fan_out), jnp.float32, -bound, bound)
        return w, b

    k1, k2, k3 = jax.random.split(key, 3)
    w1, b1 = linear(k1, input_size, hidden_size)
    w2, b2 = linear(k2, hidden_size, hidden_size)
    w3, b3 = linear(k3, hidden_size, output_size)
    return dict(w1=w1, b1=b1, w2=w2, b2=b2, w3=w3, b3=b3)


def dnn_reference(x, p, compute_dtype=jnp.float32):
    """Plain-JAX reference. With compute_dtype=bf16 it mirrors the kernel's
    mixed-precision scheme (bf16 dot operands, f32 accumulation/elementwise)."""
    c = lambda a: a.astype(compute_dtype)
    h = jnp.dot(c(x), c(p["w1"]), preferred_element_type=jnp.float32) + p["b1"]
    for _ in range(6):
        h = jnp.dot(c(jnp.maximum(h, 0.0)), c(p["w2"]),
                    preferred_element_type=jnp.float32) + p["b2"]
    return jnp.dot(c(jnp.maximum(h, 0.0)), c(p["w3"]),
                   preferred_element_type=jnp.float32) + p["b3"]


if __name__ == "__main__":
    input_size, hidden_size, output_size = 32, 32, 16
    batch = 8

    key = jax.random.PRNGKey(0)
    kx, kp, kx2 = jax.random.split(key, 3)
    x = jax.random.normal(kx, (batch, input_size), jnp.float32)
    params = init_params(kp, input_size, hidden_size, output_size)

    # --- main small-shape check (single batch tile, padded to 128 rows) ---
    out = jax.block_until_ready(dnn_forward(x, params))
    assert out.shape == (batch, output_size)

    ref_mixed = dnn_reference(x, params, compute_dtype=jnp.bfloat16)
    ref_f32 = dnn_reference(x, params, compute_dtype=jnp.float32)
    assert jnp.allclose(out, ref_mixed, atol=2e-3, rtol=2e-3), \
        "mismatch vs mixed-precision reference"
    assert jnp.allclose(out, ref_f32, atol=5e-2, rtol=5e-2), \
        "mismatch vs f32 reference"

    # --- exercise multi-tile grid (>=2 steps), batch padding, sub-slicing ---
    batch2 = 300
    x2 = jax.random.normal(kx2, (batch2, input_size), jnp.float32)
    out2 = jax.block_until_ready(dnn_forward(x2, params))
    assert out2.shape == (batch2, output_size)
    ref2 = dnn_reference(x2, params, compute_dtype=jnp.bfloat16)
    assert jnp.allclose(out2, ref2, atol=2e-3, rtol=2e-3), \
        "mismatch vs reference (tiled/padded batch)"

    print("KERNEL_OK")
</pallas_src>

<mosaic_0001>
module attributes {stable_mosaic.version = 11 : i64} {
  func.func @dnn_kernel(%arg0: i32, %arg1: memref<128x32xbf16, #tpu.memory_space<vmem>>, %arg2: memref<32x32xbf16, #tpu.memory_space<vmem>>, %arg3: memref<1x32xf32, #tpu.memory_space<vmem>>, %arg4: memref<32x32xbf16, #tpu.memory_space<vmem>>, %arg5: memref<1x32xf32, #tpu.memory_space<vmem>>, %arg6: memref<32x16xbf16, #tpu.memory_space<vmem>>, %arg7: memref<1x16xf32, #tpu.memory_space<vmem>>, %arg8: memref<128x16xf32, #tpu.memory_space<vmem>>) attributes {dimension_semantics = [#tpu.dimension_semantics<parallel>], iteration_bounds = array<i64: 1>, scalar_prefetch = 0 : i64, scratch_operands = 0 : i64, tpu.core_type = #tpu.core_type<tc>, window_params = [{transform_indices = @transform_0, window_bounds = array<i64: 128, 32>}, {pipeline_mode = #tpu.pipeline_mode<synchronous>, transform_indices = @transform_1, window_bounds = array<i64: 32, 32>}, {pipeline_mode = #tpu.pipeline_mode<synchronous>, transform_indices = @transform_2, window_bounds = array<i64: 1, 32>}, {pipeline_mode = #tpu.pipeline_mode<synchronous>, transform_indices = @transform_3, window_bounds = array<i64: 32, 32>}, {pipeline_mode = #tpu.pipeline_mode<synchronous>, transform_indices = @transform_4, window_bounds = array<i64: 1, 32>}, {pipeline_mode = #tpu.pipeline_mode<synchronous>, transform_indices = @transform_5, window_bounds = array<i64: 32, 16>}, {pipeline_mode = #tpu.pipeline_mode<synchronous>, transform_indices = @transform_6, window_bounds = array<i64: 1, 16>}, {transform_indices = @transform_7, window_bounds = array<i64: 128, 16>}]} {
    %c0 = arith.constant 0 : index
    %c0_0 = arith.constant 0 : index
    %0 = vector.load %arg2[%c0, %c0_0] : memref<32x32xbf16, #tpu.memory_space<vmem>>, vector<32x32xbf16>
    %c0_1 = arith.constant 0 : index
    %c0_2 = arith.constant 0 : index
    %1 = vector.load %arg4[%c0_1, %c0_2] : memref<32x32xbf16, #tpu.memory_space<vmem>>, vector<32x32xbf16>
    %c0_3 = arith.constant 0 : index
    %c0_4 = arith.constant 0 : index
    %2 = vector.load %arg6[%c0_3, %c0_4] : memref<32x16xbf16, #tpu.memory_space<vmem>>, vector<32x16xbf16>
    %c0_5 = arith.constant 0 : index
    %c0_6 = arith.constant 0 : index
    %3 = vector.load %arg3[%c0_5, %c0_6] : memref<1x32xf32, #tpu.memory_space<vmem>>, vector<1x32xf32>
    %c0_7 = arith.constant 0 : index
    %c0_8 = arith.constant 0 : index
    %4 = vector.load %arg5[%c0_7, %c0_8] : memref<1x32xf32, #tpu.memory_space<vmem>>, vector<1x32xf32>
    %c0_9 = arith.constant 0 : index
    %c0_10 = arith.constant 0 : index
    %5 = vector.load %arg7[%c0_9, %c0_10] : memref<1x16xf32, #tpu.memory_space<vmem>>, vector<1x16xf32>
    %c0_11 = arith.constant 0 : index
    %c0_12 = arith.constant 0 : index
    %6 = vector.load %arg1[%c0_11, %c0_12] : memref<128x32xbf16, #tpu.memory_space<vmem>>, vector<128x32xbf16>
    %cst = arith.constant dense<0.000000e+00> : vector<128x32xf32>
    %7 = tpu.matmul %6, %0, %cst {dimension_numbers = #tpu.dot_dimension_numbers<[1], [0], [0], [1], [0, 0, 1, 1], [], []>} : vector<128x32xbf16>, vector<32x32xbf16>, vector<128x32xf32> -> vector<128x32xf32>
    %8 = vector.broadcast %3 : vector<1x32xf32> to vector<128x32xf32>
    %9 = arith.addf %7, %8 : vector<128x32xf32>
    %cst_13 = arith.constant 0.000000e+00 : f32
    %10 = vector.broadcast %cst_13 : f32 to vector<128x32xf32>
    %11 = arith.maximumf %9, %10 : vector<128x32xf32>
    %12 = arith.truncf %11 : vector<128x32xf32> to vector<128x32xbf16>
    %cst_14 = arith.constant dense<0.000000e+00> : vector<128x32xf32>
    %13 = tpu.matmul %12, %1, %cst_14 {dimension_numbers = #tpu.dot_dimension_numbers<[1], [0], [0], [1], [0, 0, 1, 1], [], []>} : vector<128x32xbf16>, vector<32x32xbf16>, vector<128x32xf32> -> vector<128x32xf32>
    %14 = vector.broadcast %4 : vector<1x32xf32> to vector<128x32xf32>
    %15 = arith.addf %13, %14 : vector<128x32xf32>
    %cst_15 = arith.constant 0.000000e+00 : f32
    %16 = vector.broadcast %cst_15 : f32 to vector<128x32xf32>
    %17 = arith.maximumf %15, %16 : vector<128x32xf32>
    %18 = arith.truncf %17 : vector<128x32xf32> to vector<128x32xbf16>
    %cst_16 = arith.constant dense<0.000000e+00> : vector<128x32xf32>
    %19 = tpu.matmul %18, %1, %cst_16 {dimension_numbers = #tpu.dot_dimension_numbers<[1], [0], [0], [1], [0, 0, 1, 1], [], []>} : vector<128x32xbf16>, vector<32x32xbf16>, vector<128x32xf32> -> vector<128x32xf32>
    %20 = vector.broadcast %4 : vector<1x32xf32> to vector<128x32xf32>
    %21 = arith.addf %19, %20 : vector<128x32xf32>
    %cst_17 = arith.constant 0.000000e+00 : f32
    %22 = vector.broadcast %cst_17 : f32 to vector<128x32xf32>
    %23 = arith.maximumf %21, %22 : vector<128x32xf32>
    %24 = arith.truncf %23 : vector<128x32xf32> to vector<128x32xbf16>
    %cst_18 = arith.constant dense<0.000000e+00> : vector<128x32xf32>
    %25 = tpu.matmul %24, %1, %cst_18 {dimension_numbers = #tpu.dot_dimension_numbers<[1], [0], [0], [1], [0, 0, 1, 1], [], []>} : vector<128x32xbf16>, vector<32x32xbf16>, vector<128x32xf32> -> vector<128x32xf32>
    %26 = vector.broadcast %4 : vector<1x32xf32> to vector<128x32xf32>
    %27 = arith.addf %25, %26 : vector<128x32xf32>
    %cst_19 = arith.constant 0.000000e+00 : f32
    %28 = vector.broadcast %cst_19 : f32 to vector<128x32xf32>
    %29 = arith.maximumf %27, %28 : vector<128x32xf32>
    %30 = arith.truncf %29 : vector<128x32xf32> to vector<128x32xbf16>
    %cst_20 = arith.constant dense<0.000000e+00> : vector<128x32xf32>
    %31 = tpu.matmul %30, %1, %cst_20 {dimension_numbers = #tpu.dot_dimension_numbers<[1], [0], [0], [1], [0, 0, 1, 1], [], []>} : vector<128x32xbf16>, vector<32x32xbf16>, vector<128x32xf32> -> vector<128x32xf32>
    %32 = vector.broadcast %4 : vector<1x32xf32> to vector<128x32xf32>
    %33 = arith.addf %31, %32 : vector<128x32xf32>
    %cst_21 = arith.constant 0.000000e+00 : f32
    %34 = vector.broadcast %cst_21 : f32 to vector<128x32xf32>
    %35 = arith.maximumf %33, %34 : vector<128x32xf32>
    %36 = arith.truncf %35 : vector<128x32xf32> to vector<128x32xbf16>
    %cst_22 = arith.constant dense<0.000000e+00> : vector<128x32xf32>
    %37 = tpu.matmul %36, %1, %cst_22 {dimension_numbers = #tpu.dot_dimension_numbers<[1], [0], [0], [1], [0, 0, 1, 1], [], []>} : vector<128x32xbf16>, vector<32x32xbf16>, vector<128x32xf32> -> vector<128x32xf32>
    %38 = vector.broadcast %4 : vector<1x32xf32> to vector<128x32xf32>
    %39 = arith.addf %37, %38 : vector<128x32xf32>
    %cst_23 = arith.constant 0.000000e+00 : f32
    %40 = vector.broadcast %cst_23 : f32 to vector<128x32xf32>
    %41 = arith.maximumf %39, %40 : vector<128x32xf32>
    %42 = arith.truncf %41 : vector<128x32xf32> to vector<128x32xbf16>
    %cst_24 = arith.constant dense<0.000000e+00> : vector<128x32xf32>
    %43 = tpu.matmul %42, %1, %cst_24 {dimension_numbers = #tpu.dot_dimension_numbers<[1], [0], [0], [1], [0, 0, 1, 1], [], []>} : vector<128x32xbf16>, vector<32x32xbf16>, vector<128x32xf32> -> vector<128x32xf32>
    %44 = vector.broadcast %4 : vector<1x32xf32> to vector<128x32xf32>
    %45 = arith.addf %43, %44 : vector<128x32xf32>
    %cst_25 = arith.constant 0.000000e+00 : f32
    %46 = vector.broadcast %cst_25 : f32 to vector<128x32xf32>
    %47 = arith.maximumf %45, %46 : vector<128x32xf32>
    %48 = arith.truncf %47 : vector<128x32xf32> to vector<128x32xbf16>
    %cst_26 = arith.constant dense<0.000000e+00> : vector<128x16xf32>
    %49 = tpu.matmul %48, %2, %cst_26 {dimension_numbers = #tpu.dot_dimension_numbers<[1], [0], [0], [1], [0, 0, 1, 1], [], []>} : vector<128x32xbf16>, vector<32x16xbf16>, vector<128x16xf32> -> vector<128x16xf32>
    %50 = vector.broadcast %5 : vector<1x16xf32> to vector<128x16xf32>
    %51 = arith.addf %49, %50 : vector<128x16xf32>
    %c0_27 = arith.constant 0 : index
    %c0_28 = arith.constant 0 : index
    %52 = vector.load %arg8[%c0_27, %c0_28] : memref<128x16xf32, #tpu.memory_space<vmem>>, vector<128x16xf32>
    tpu.vector_store %arg8[%c0_27, %c0_28], %51 {strides = array<i32>} : memref<128x16xf32, #tpu.memory_space<vmem>>, vector<128x16xf32>,
    return
  }
  func.func @transform_0(%arg0: i32) -> (i32, i32) {
    %c0_i32 = arith.constant 0 : i32
    %c0_i32_0 = arith.constant 0 : i32
    return %arg0, %c0_i32 : i32, i32
  }
  func.func @transform_1(%arg0: i32) -> (i32, i32) {
    %c0_i32 = arith.constant 0 : i32
    %c0_i32_0 = arith.constant 0 : i32
    %c0_i32_1 = arith.constant 0 : i32
    return %c0_i32, %c0_i32_0 : i32, i32
  }
  func.func @transform_2(%arg0: i32) -> (i32, i32) {
    %c0_i32 = arith.constant 0 : i32
    %c0_i32_0 = arith.constant 0 : i32
    %c0_i32_1 = arith.constant 0 : i32
    return %c0_i32, %c0_i32_0 : i32, i32
  }
  func.func @transform_3(%arg0: i32) -> (i32, i32) {
    %c0_i32 = arith.constant 0 : i32
    %c0_i32_0 = arith.constant 0 : i32
    %c0_i32_1 = arith.constant 0 : i32
    return %c0_i32, %c0_i32_0 : i32, i32
  }
  func.func @transform_4(%arg0: i32) -> (i32, i32) {
    %c0_i32 = arith.constant 0 : i32
    %c0_i32_0 = arith.constant 0 : i32
    %c0_i32_1 = arith.constant 0 : i32
    return %c0_i32, %c0_i32_0 : i32, i32
  }
  func.func @transform_5(%arg0: i32) -> (i32, i32) {
    %c0_i32 = arith.constant 0 : i32
    %c0_i32_0 = arith.constant 0 : i32
    %c0_i32_1 = arith.constant 0 : i32
    return %c0_i32, %c0_i32_0 : i32, i32
  }
  func.func @transform_6(%arg0: i32) -> (i32, i32) {
    %c0_i32 = arith.constant 0 : i32
    %c0_i32_0 = arith.constant 0 : i32
    %c0_i32_1 = arith.constant 0 : i32
    return %c0_i32, %c0_i32_0 : i32, i32
  }
  func.func @transform_7(%arg0: i32) -> (i32, i32) {
    %c0_i32 = arith.constant 0 : i32
    %c0_i32_0 = arith.constant 0 : i32
    return %arg0, %c0_i32 : i32, i32
  }
}

</mosaic_0001>

<llo_original>
// kernel: tpu_custom_call.1
$region0: #{tpu_custom_call.1}
  #allocation0 [shape = 'u32[]', space=smem, size = 0x4, offset = 0x4, fixed_abs, tag = 'smem constant byte address 0x4 - core index']
  #allocation1 [shape = 'u32[144,128]{1,0:T(1,128)}', space=vmem, size = 0x12000, scoped, tag = 'internal scratch']
  %s0 = inlined_call_operand.vmem [shape: bf16[128,32], index: 0, kind: input, shape index: {}]
  %s1 = inlined_call_operand.vmem [shape: bf16[32,32], index: 1, kind: input, shape index: {}]
  %s2 = inlined_call_operand.vmem [shape: f32[1,32], index: 2, kind: input, shape index: {}]
  %s3 = inlined_call_operand.vmem [shape: bf16[32,32], index: 3, kind: input, shape index: {}]
  %s4 = inlined_call_operand.vmem [shape: f32[1,32], index: 4, kind: input, shape index: {}]
  %s5 = inlined_call_operand.vmem [shape: bf16[32,16], index: 5, kind: input, shape index: {}]
  %s6 = inlined_call_operand.vmem [shape: f32[1,16], index: 6, kind: input, shape index: {}]
  %s7 = inlined_call_operand.vmem [shape: f32[128,16], index: 7, kind: output, shape index: {}]
  %s8 = sld [smem:[#allocation0]]
  $region38: #{tpu_custom_call.1} parent=0
    _
  %s10 = ssub.s32 1, %s8
  %s11 = scalar_select 0, %s10, %s8
  // Predicated region
  $region2: #{tpu_custom_call.1} parent=0 // pred_check
    _
  $region3: #{tpu_custom_call.1} parent=0 // pred_check_branch
    %13 = sbr.rel (0) target = $region5
  $region4: #{tpu_custom_call.1} parent=0 // pred_region
    _
  $region5: #{tpu_custom_call.1} parent=0 // pred_fallthru
    _
  // Predicated region
  $region6: #{tpu_custom_call.1} parent=0 // pred_check
    _
  $region7: #{tpu_custom_call.1} parent=0 // pred_check_branch
    %15 = sbr.rel (0) target = $region9
  $region8: #{tpu_custom_call.1} parent=0 // pred_region
    _
  $region9: #{tpu_custom_call.1} parent=0 // pred_fallthru
    _
  // Predicated region
  $region10: #{tpu_custom_call.1} parent=0 // pred_check
    _
  $region11: #{tpu_custom_call.1} parent=0 // pred_check_branch
    %17 = sbr.rel (0) target = $region13
  $region12: #{tpu_custom_call.1} parent=0 // pred_region
    _
  $region13: #{tpu_custom_call.1} parent=0 // pred_fallthru
    _
  // Predicated region
  $region14: #{tpu_custom_call.1} parent=0 // pred_check
    _
  $region15: #{tpu_custom_call.1} parent=0 // pred_check_branch
    %19 = sbr.rel (0) target = $region17
  $region16: #{tpu_custom_call.1} parent=0 // pred_region
    _
  $region17: #{tpu_custom_call.1} parent=0 // pred_fallthru
    _
  // Predicated region
  $region18: #{tpu_custom_call.1} parent=0 // pred_check
    _
  $region19: #{tpu_custom_call.1} parent=0 // pred_check_branch
    %21 = sbr.rel (0) target = $region21
  $region20: #{tpu_custom_call.1} parent=0 // pred_region
    _
  $region21: #{tpu_custom_call.1} parent=0 // pred_fallthru
    _
  // Predicated region
  $region22: #{tpu_custom_call.1} parent=0 // pred_check
    _
  $region23: #{tpu_custom_call.1} parent=0 // pred_check_branch
    %23 = sbr.rel (0) target = $region25
  $region24: #{tpu_custom_call.1} parent=0 // pred_region
    _
  $region25: #{tpu_custom_call.1} parent=0 // pred_fallthru
    _
  // Predicated region
  $region26: #{tpu_custom_call.1} parent=0 // pred_check
    _
  $region27: #{tpu_custom_call.1} parent=0 // pred_check_branch
    %25 = sbr.rel (0) target = $region29
  $region28: #{tpu_custom_call.1} parent=0 // pred_region
    _
  $region29: #{tpu_custom_call.1} parent=0 // pred_fallthru
    _
  %v27 = vld [vmem:[%s1] sm:$0xf]
  %v28 = vld [vmem:[%s1 + $0x4] sm:$0xf]
  %v29 = vld [vmem:[%s1 + $0x8] sm:$0xf]
  %v30 = vld [vmem:[%s1 + $0xc] sm:$0xf]
  %v31 = vld [vmem:[%s3] sm:$0xf]
  %v32 = vld [vmem:[%s3 + $0x4] sm:$0xf]
  %v33 = vld [vmem:[%s3 + $0x8] sm:$0xf]
  %v34 = vld [vmem:[%s3 + $0xc] sm:$0xf]
  %v35 = vld [vmem:[%s5] sm:$0xf]
  %v36 = vld [vmem:[%s5 + $0x4] sm:$0xf]
  %v37 = vld [vmem:[%s5 + $0x8] sm:$0xf]
  %v38 = vld [vmem:[%s5 + $0xc] sm:$0xf]
  %v39 = vld [vmem:[%s2] sm:$0x1]
  %v40 = vld [vmem:[%s4] sm:$0x1]
  %v41 = vld [vmem:[%s6] sm:$0x1]
  %v42 = vld [vmem:[%s0] sm:$0xf]
  %v43 = vld [vmem:[%s0 + $0x4] sm:$0xf]
  %v44 = vld [vmem:[%s0 + $0x8] sm:$0xf]
  %v45 = vld [vmem:[%s0 + $0xc] sm:$0xf]
  %v46 = vld [vmem:[%s0 + $0x10] sm:$0xf]
  %v47 = vld [vmem:[%s0 + $0x14] sm:$0xf]
  %v48 = vld [vmem:[%s0 + $0x18] sm:$0xf]
  %v49 = vld [vmem:[%s0 + $0x1c] sm:$0xf]
  %v50 = vld [vmem:[%s0 + $0x20] sm:$0xf]
  %v51 = vld [vmem:[%s0 + $0x24] sm:$0xf]
  %v52 = vld [vmem:[%s0 + $0x28] sm:$0xf]
  %v53 = vld [vmem:[%s0 + $0x2c] sm:$0xf]
  %v54 = vld [vmem:[%s0 + $0x30] sm:$0xf]
  %v55 = vld [vmem:[%s0 + $0x34] sm:$0xf]
  %v56 = vld [vmem:[%s0 + $0x38] sm:$0xf]
  %v57 = vld [vmem:[%s0 + $0x3c] sm:$0xf]
  %v59 = vlaneseq
  %v60 = vshrl.u32 %v59, 7
  %v61 = vsub.s32 0, %v60
  %v62 = vrot.slane %v39, %v61
  %v80 = vunpack.c.l.b16 %v42
  %v81 = vunpack.c.l.b16 %v43
  %v82 = vunpack.c.l.b16 %v44
  %v83 = vunpack.c.l.b16 %v45
  %v84 = vunpack.c.l.b16 %v46
  %v85 = vunpack.c.l.b16 %v47
  %v86 = vunpack.c.l.b16 %v48
  %v87 = vunpack.c.l.b16 %v49
  %v88 = vunpack.c.l.b16 %v50
  %v89 = vunpack.c.l.b16 %v51
  %v90 = vunpack.c.l.b16 %v52
  %v91 = vunpack.c.l.b16 %v53
  %v92 = vunpack.c.l.b16 %v54
  %v93 = vunpack.c.l.b16 %v55
  %v94 = vunpack.c.l.b16 %v56
  %v95 = vunpack.c.l.b16 %v57
  %v96 = vpack.c.b16 %v81, %v80
  %v97 = vpack.c.b16 %v83, %v82
  %v98 = vpack.c.b16 %v85, %v84
  %v99 = vpack.c.b16 %v87, %v86
  %v100 = vpack.c.b16 %v89, %v88
  %v101 = vpack.c.b16 %v91, %v90
  %v102 = vpack.c.b16 %v93, %v92
  %v103 = vpack.c.b16 %v95, %v94
  %v108 = vunpack.c.l.b16 %v27
  %v109 = vunpack.c.l.b16 %v28
  %v110 = vunpack.c.l.b16 %v29
  %v111 = vunpack.c.l.b16 %v30
  %v112 = vpack.c.b16 %v109, %v108
  %v113 = vpack.c.b16 %v111, %v110
  %vm116 = vcmask 261120
  %v118 = vsel %vm116, %v96, 0
  %v121 = vsel %vm116, %v97, 0
  %v124 = vsel %vm116, %v98, 0
  %v127 = vsel %vm116, %v99, 0
  %v130 = vsel %vm116, %v100, 0
  %v133 = vsel %vm116, %v101, 0
  %v136 = vsel %vm116, %v102, 0
  %v139 = vsel %vm116, %v103, 0
  %141 = vmatprep.subr.bf16.mxu0 0
  %142 = vmatpush1.bf16.msra.mxu0 0
  %143 = vmatprep.subr.bf16.mxu0 0
  %144 = vmatpush1.bf16.msra.mxu0 0
  %145 = vmatprep.subr.bf16.mxu0 0
  %146 = vmatpush1.bf16.msra.mxu0 0
  %147 = vmatprep.subr.bf16.mxu0 0
  %148 = vmatpush1.bf16.msra.mxu0 0
  %149 = vmatprep.subr.bf16.mxu0 0
  %150 = vmatpush1.bf16.msra.mxu0 0
  %151 = vmatprep.subr.bf16.mxu0 0
  %152 = vmatpush1.bf16.msra.mxu0 0
  %153 = vmatprep.subr.bf16.mxu0 0
  %154 = vmatpush1.bf16.msra.mxu0 %v113
  %155 = vmatprep.subr.bf16.mxu0 0
  %156 = vmatpush1.bf16.msra.mxu0 %v112
  %157 = vmatprep.subr.bf16.mxu0 0
  %158 = vmatpush2.bf16.msra.mxu0 0
  %159 = vmatprep.subr.bf16.mxu0 0
  %160 = vmatpush2.bf16.msra.mxu0 0
  %161 = vmatprep.subr.bf16.mxu0 0
  %162 = vmatpush2.bf16.msra.mxu0 0
  %163 = vmatprep.subr.bf16.mxu0 0
  %164 = vmatpush2.bf16.msra.mxu0 0
  %165 = vmatprep.subr.bf16.mxu0 0
  %166 = vmatpush2.bf16.msra.mxu0 0
  %167 = vmatprep.subr.bf16.mxu0 0
  %168 = vmatpush2.bf16.msra.mxu0 0
  %169 = vmatprep.subr.bf16.mxu0 0
  %170 = vmatpush2.bf16.msra.mxu0 0
  %171 = vmatprep.subr.bf16.mxu0 0
  %172 = vmatpush2.bf16.msra.mxu0 0
  %173 = vmatprep.mubr.bf16.mxu0 0
  %174 = vmatmul.mubr.bf16.gmra.mxu0 %v118
  %v175 = vpop.f32.mrf.mxu0
  %v176 = vadd.f32 %v62, %v175
  %v177 = vpop.f32.mrf.mxu0
  %v178 = vpop.f32.mrf.mxu0
  %v179 = vadd.f32 %v62, %v178
  %v180 = vpop.f32.mrf.mxu0
  %181 = vmatprep.mubr.bf16.mxu0 0
  %182 = vmatmul.mubr.bf16.gmra.mxu0 %v121
  %v183 = vpop.f32.mrf.mxu0
  %v184 = vadd.f32 %v62, %v183
  %v185 = vpop.f32.mrf.mxu0
  %v186 = vpop.f32.mrf.mxu0
  %v187 = vadd.f32 %v62, %v186
  %v188 = vpop.f32.mrf.mxu0
  %189 = vmatprep.mubr.bf16.mxu0 0
  %190 = vmatmul.mubr.bf16.gmra.mxu0 %v124
  %v191 = vpop.f32.mrf.mxu0
  %v192 = vadd.f32 %v62, %v191
  %v193 = vpop.f32.mrf.mxu0
  %v194 = vpop.f32.mrf.mxu0
  %v195 = vadd.f32 %v62, %v194
  %v196 = vpop.f32.mrf.mxu0
  %197 = vmatprep.mubr.bf16.mxu0 0
  %198 = vmatmul.mubr.bf16.gmra.mxu0 %v127
  %v199 = vpop.f32.mrf.mxu0
  %v200 = vadd.f32 %v62, %v199
  %v201 = vpop.f32.mrf.mxu0
  %v202 = vpop.f32.mrf.mxu0
  %v203 = vadd.f32 %v62, %v202
  %v204 = vpop.f32.mrf.mxu0
  %205 = vmatprep.mubr.bf16.mxu0 0
  %206 = vmatmul.mubr.bf16.gmra.mxu0 %v130
  %v207 = vpop.f32.mrf.mxu0
  %v208 = vadd.f32 %v62, %v207
  %v209 = vpop.f32.mrf.mxu0
  %v210 = vpop.f32.mrf.mxu0
  %v211 = vadd.f32 %v62, %v210
  %v212 = vpop.f32.mrf.mxu0
  %213 = vmatprep.mubr.bf16.mxu0 0
  %214 = vmatmul.mubr.bf16.gmra.mxu0 %v133
  %v215 = vpop.f32.mrf.mxu0
  %v216 = vadd.f32 %v62, %v215
  %v217 = vpop.f32.mrf.mxu0
  %v218 = vpop.f32.mrf.mxu0
  %v219 = vadd.f32 %v62, %v218
  %v220 = vpop.f32.mrf.mxu0
  %221 = vmatprep.mubr.bf16.mxu0 0
  %222 = vmatmul.mubr.bf16.gmra.mxu0 %v136
  %v223 = vpop.f32.mrf.mxu0
  %v224 = vadd.f32 %v62, %v223
  %v225 = vpop.f32.mrf.mxu0
  %v226 = vpop.f32.mrf.mxu0
  %v227 = vadd.f32 %v62, %v226
  %v228 = vpop.f32.mrf.mxu0
  %229 = vmatprep.mubr.bf16.mxu0 0
  %230 = vmatmul.mubr.bf16.gmra.mxu0 %v139
  %v231 = vpop.f32.mrf.mxu0
  %v232 = vadd.f32 %v62, %v231
  %v233 = vpop.f32.mrf.mxu0
  %v234 = vpop.f32.mrf.mxu0
  %v235 = vadd.f32 %v62, %v234
  %v236 = vpop.f32.mrf.mxu0
  %237 = vdwg.mxu0
  %v238 = vmax.f32 %v176, 0.0
  %v239 = vmax.f32 %v179, 0.0
  %v240 = vmax.f32 %v184, 0.0
  %v241 = vmax.f32 %v187, 0.0
  %v242 = vmax.f32 %v192, 0.0
  %v243 = vmax.f32 %v195, 0.0
  %v244 = vmax.f32 %v200, 0.0
  %v245 = vmax.f32 %v203, 0.0
  %v246 = vmax.f32 %v208, 0.0
  %v247 = vmax.f32 %v211, 0.0
  %v248 = vmax.f32 %v216, 0.0
  %v249 = vmax.f32 %v219, 0.0
  %v250 = vmax.f32 %v224, 0.0
  %v251 = vmax.f32 %v227, 0.0
  %v252 = vmax.f32 %v232, 0.0
  %v253 = vmax.f32 %v235, 0.0
  %v254 = vpack.c.bf16 %v239, %v238
  %v255 = vpack.c.bf16 %v241, %v240
  %v256 = vpack.c.bf16 %v243, %v242
  %v257 = vpack.c.bf16 %v245, %v244
  %v258 = vpack.c.bf16 %v247, %v246
  %v259 = vpack.c.bf16 %v249, %v248
  %v260 = vpack.c.bf16 %v251, %v250
  %v261 = vpack.c.bf16 %v253, %v252
  %v263 = vlaneseq
  %v264 = vshrl.u32 %v263, 7
  %v265 = vsub.s32 0, %v264
  %v266 = vrot.slane %v40, %v265
  %v272 = vunpack.c.l.b16 %v31
  %v273 = vunpack.c.l.b16 %v32
  %v274 = vunpack.c.l.b16 %v33
  %v275 = vunpack.c.l.b16 %v34
  %v276 = vpack.c.b16 %v273, %v272
  %v277 = vpack.c.b16 %v275, %v274
  %v281 = vsel %vm116, %v254, 0
  %v284 = vsel %vm116, %v255, 0
  %v287 = vsel %vm116, %v256, 0
  %v290 = vsel %vm116, %v257, 0
  %v293 = vsel %vm116, %v258, 0
  %v296 = vsel %vm116, %v259, 0
  %v299 = vsel %vm116, %v260, 0
  %v302 = vsel %vm116, %v261, 0
  %304 = vmatprep.subr.bf16.mxu0 0
  %305 = vmatpush1.bf16.msra.mxu0 0
  %306 = vmatprep.subr.bf16.mxu0 0
  %307 = vmatpush1.bf16.msra.mxu0 0
  %308 = vmatprep.subr.bf16.mxu0 0
  %309 = vmatpush1.bf16.msra.mxu0 0
  %310 = vmatprep.subr.bf16.mxu0 0
  %311 = vmatpush1.bf16.msra.mxu0 0
  %312 = vmatprep.subr.bf16.mxu0 0
  %313 = vmatpush1.bf16.msra.mxu0 0
  %314 = vmatprep.subr.bf16.mxu0 0
  %315 = vmatpush1.bf16.msra.mxu0 0
  %316 = vmatprep.subr.bf16.mxu0 0
  %317 = vmatpush1.bf16.msra.mxu0 %v277
  %318 = vmatprep.subr.bf16.mxu0 0
  %319 = vmatpush1.bf16.msra.mxu0 %v276
  %320 = vmatprep.subr.bf16.mxu0 0
  %321 = vmatpush2.bf16.msra.mxu0 0
  %322 = vmatprep.subr.bf16.mxu0 0
  %323 = vmatpush2.bf16.msra.mxu0 0
  %324 = vmatprep.subr.bf16.mxu0 0
  %325 = vmatpush2.bf16.msra.mxu0 0
  %326 = vmatprep.subr.bf16.mxu0 0
  %327 = vmatpush2.bf16.msra.mxu0 0
  %328 = vmatprep.subr.bf16.mxu0 0
  %329 = vmatpush2.bf16.msra.mxu0 0
  %330 = vmatprep.subr.bf16.mxu0 0
  %331 = vmatpush2.bf16.msra.mxu0 0
  %332 = vmatprep.subr.bf16.mxu0 0
  %333 = vmatpush2.bf16.msra.mxu0 0
  %334 = vmatprep.subr.bf16.mxu0 0
  %335 = vmatpush2.bf16.msra.mxu0 0
  %336 = vmatprep.mubr.bf16.mxu0 0
  %337 = vmatmul.mubr.bf16.gmra.mxu0 %v281
  %v338 = vpop.f32.mrf.mxu0
  %v339 = vadd.f32 %v266, %v338
  %v340 = vpop.f32.mrf.mxu0
  %v341 = vpop.f32.mrf.mxu0
  %v342 = vadd.f32 %v266, %v341
  %v343 = vpop.f32.mrf.mxu0
  %344 = vmatprep.mubr.bf16.mxu0 0
  %345 = vmatmul.mubr.bf16.gmra.mxu0 %v284
  %v346 = vpop.f32.mrf.mxu0
  %v347 = vadd.f32 %v266, %v346
  %v348 = vpop.f32.mrf.mxu0
  %v349 = vpop.f32.mrf.mxu0
  %v350 = vadd.f32 %v266, %v349
  %v351 = vpop.f32.mrf.mxu0
  %352 = vmatprep.mubr.bf16.mxu0 0
  %353 = vmatmul.mubr.bf16.gmra.mxu0 %v287
  %v354 = vpop.f32.mrf.mxu0
  %v355 = vadd.f32 %v266, %v354
  %v356 = vpop.f32.mrf.mxu0
  %v357 = vpop.f32.mrf.mxu0
  %v358 = vadd.f32 %v266, %v357
  %v359 = vpop.f32.mrf.mxu0
  %360 = vmatprep.mubr.bf16.mxu0 0
  %361 = vmatmul.mubr.bf16.gmra.mxu0 %v290
  %v362 = vpop.f32.mrf.mxu0
  %v363 = vadd.f32 %v266, %v362
  %v364 = vpop.f32.mrf.mxu0
  %v365 = vpop.f32.mrf.mxu0
  %v366 = vadd.f32 %v266, %v365
  %v367 = vpop.f32.mrf.mxu0
  %368 = vmatprep.mubr.bf16.mxu0 0
  %369 = vmatmul.mubr.bf16.gmra.mxu0 %v293
  %v370 = vpop.f32.mrf.mxu0
  %v371 = vadd.f32 %v266, %v370
  %v372 = vpop.f32.mrf.mxu0
  %v373 = vpop.f32.mrf.mxu0
  %v374 = vadd.f32 %v266, %v373
  %v375 = vpop.f32.mrf.mxu0
  %376 = vmatprep.mubr.bf16.mxu0 0
  %377 = vmatmul.mubr.bf16.gmra.mxu0 %v296
  %v378 = vpop.f32.mrf.mxu0
  %v379 = vadd.f32 %v266, %v378
  %v380 = vpop.f32.mrf.mxu0
  %v381 = vpop.f32.mrf.mxu0
  %v382 = vadd.f32 %v266, %v381
  %v383 = vpop.f32.mrf.mxu0
  %384 = vmatprep.mubr.bf16.mxu0 0
  %385 = vmatmul.mubr.bf16.gmra.mxu0 %v299
  %v386 = vpop.f32.mrf.mxu0
  %v387 = vadd.f32 %v266, %v386
  %v388 = vpop.f32.mrf.mxu0
  %v389 = vpop.f32.mrf.mxu0
  %v390 = vadd.f32 %v266, %v389
  %v391 = vpop.f32.mrf.mxu0
  %392 = vmatprep.mubr.bf16.mxu0 0
  %393 = vmatmul.mubr.bf16.gmra.mxu0 %v302
  %v394 = vpop.f32.mrf.mxu0
  %v395 = vadd.f32 %v266, %v394
  %v396 = vpop.f32.mrf.mxu0
  %v397 = vpop.f32.mrf.mxu0
  %v398 = vadd.f32 %v266, %v397
  %v399 = vpop.f32.mrf.mxu0
  %400 = vdwg.mxu0
  %v401 = vmax.f32 %v339, 0.0
  %v402 = vmax.f32 %v342, 0.0
  %v403 = vmax.f32 %v347, 0.0
  %v404 = vmax.f32 %v350, 0.0
  %v405 = vmax.f32 %v355, 0.0
  %v406 = vmax.f32 %v358, 0.0
  %v407 = vmax.f32 %v363, 0.0
  %v408 = vmax.f32 %v366, 0.0
  %v409 = vmax.f32 %v371, 0.0
  %v410 = vmax.f32 %v374, 0.0
  %v411 = vmax.f32 %v379, 0.0
  %v412 = vmax.f32 %v382, 0.0
  %v413 = vmax.f32 %v387, 0.0
  %v414 = vmax.f32 %v390, 0.0
  %v415 = vmax.f32 %v395, 0.0
  %v416 = vmax.f32 %v398, 0.0
  %v417 = vpack.c.bf16 %v402, %v401
  %v418 = vpack.c.bf16 %v404, %v403
  %v419 = vpack.c.bf16 %v406, %v405
  %v420 = vpack.c.bf16 %v408, %v407
  %v421 = vpack.c.bf16 %v410, %v409
  %v422 = vpack.c.bf16 %v412, %v411
  %v423 = vpack.c.bf16 %v414, %v413
  %v424 = vpack.c.bf16 %v416, %v415
  %v426 = vsel %vm116, %v417, 0
  %v429 = vsel %vm116, %v418, 0
  %v432 = vsel %vm116, %v419, 0
  %v435 = vsel %vm116, %v420, 0
  %v438 = vsel %vm116, %v421, 0
  %v441 = vsel %vm116, %v422, 0
  %v444 = vsel %vm116, %v423, 0
  %v447 = vsel %vm116, %v424, 0
  %449 = vmatprep.subr.bf16.mxu0 0
  %450 = vmatpush1.bf16.msra.mxu0 0
  %451 = vmatprep.subr.bf16.mxu0 0
  %452 = vmatpush1.bf16.msra.mxu0 0
  %453 = vmatprep.subr.bf16.mxu0 0
  %454 = vmatpush1.bf16.msra.mxu0 0
  %455 = vmatprep.subr.bf16.mxu0 0
  %456 = vmatpush1.bf16.msra.mxu0 0
  %457 = vmatprep.subr.bf16.mxu0 0
  %458 = vmatpush1.bf16.msra.mxu0 0
  %459 = vmatprep.subr.bf16.mxu0 0
  %460 = vmatpush1.bf16.msra.mxu0 0
  %461 = vmatprep.subr.bf16.mxu0 0
  %462 = vmatpush1.bf16.msra.mxu0 %v277
  %463 = vmatprep.subr.bf16.mxu0 0
  %464 = vmatpush1.bf16.msra.mxu0 %v276
  %465 = vmatprep.subr.bf16.mxu0 0
  %466 = vmatpush2.bf16.msra.mxu0 0
  %467 = vmatprep.subr.bf16.mxu0 0
  %468 = vmatpush2.bf16.msra.mxu0 0
  %469 = vmatprep.subr.bf16.mxu0 0
  %470 = vmatpush2.bf16.msra.mxu0 0
  %471 = vmatprep.subr.bf16.mxu0 0
  %472 = vmatpush2.bf16.msra.mxu0 0
  %473 = vmatprep.subr.bf16.mxu0 0
  %474 = vmatpush2.bf16.msra.mxu0 0
  %475 = vmatprep.subr.bf16.mxu0 0
  %476 = vmatpush2.bf16.msra.mxu0 0
  %477 = vmatprep.subr.bf16.mxu0 0
  %478 = vmatpush2.bf16.msra.mxu0 0
  %479 = vmatprep.subr.bf16.mxu0 0
  %480 = vmatpush2.bf16.msra.mxu0 0
  %481 = vmatprep.mubr.bf16.mxu0 0
  %482 = vmatmul.mubr.bf16.gmra.mxu0 %v426
  %v483 = vpop.f32.mrf.mxu0
  %v484 = vadd.f32 %v266, %v483
  %v485 = vpop.f32.mrf.mxu0
  %v486 = vpop.f32.mrf.mxu0
  %v487 = vadd.f32 %v266, %v486
  %v488 = vpop.f32.mrf.mxu0
  %489 = vmatprep.mubr.bf16.mxu0 0
  %490 = vmatmul.mubr.bf16.gmra.mxu0 %v429
  %v491 = vpop.f32.mrf.mxu0
  %v492 = vadd.f32 %v266, %v491
  %v493 = vpop.f32.mrf.mxu0
  %v494 = vpop.f32.mrf.mxu0
  %v495 = vadd.f32 %v266, %v494
  %v496 = vpop.f32.mrf.mxu0
  %497 = vmatprep.mubr.bf16.mxu0 0
  %498 = vmatmul.mubr.bf16.gmra.mxu0 %v432
  %v499 = vpop.f32.mrf.mxu0
  %v500 = vadd.f32 %v266, %v499
  %v501 = vpop.f32.mrf.mxu0
  %v502 = vpop.f32.mrf.mxu0
  %v503 = vadd.f32 %v266, %v502
  %v504 = vpop.f32.mrf.mxu0
  %505 = vmatprep.mubr.bf16.mxu0 0
  %506 = vmatmul.mubr.bf16.gmra.mxu0 %v435
  %v507 = vpop.f32.mrf.mxu0
  %v508 = vadd.f32 %v266, %v507
  %v509 = vpop.f32.mrf.mxu0
  %v510 = vpop.f32.mrf.mxu0
  %v511 = vadd.f32 %v266, %v510
  %v512 = vpop.f32.mrf.mxu0
  %513 = vmatprep.mubr.bf16.mxu0 0
  %514 = vmatmul.mubr.bf16.gmra.mxu0 %v438
  %v515 = vpop.f32.mrf.mxu0
  %v516 = vadd.f32 %v266, %v515
  %v517 = vpop.f32.mrf.mxu0
  %v518 = vpop.f32.mrf.mxu0
  %v519 = vadd.f32 %v266, %v518
  %v520 = vpop.f32.mrf.mxu0
  %521 = vmatprep.mubr.bf16.mxu0 0
  %522 = vmatmul.mubr.bf16.gmra.mxu0 %v441
  %v523 = vpop.f32.mrf.mxu0
  %v524 = vadd.f32 %v266, %v523
  %v525 = vpop.f32.mrf.mxu0
  %v526 = vpop.f32.mrf.mxu0
  %v527 = vadd.f32 %v266, %v526
  %v528 = vpop.f32.mrf.mxu0
  %529 = vmatprep.mubr.bf16.mxu0 0
  %530 = vmatmul.mubr.bf16.gmra.mxu0 %v444
  %v531 = vpop.f32.mrf.mxu0
  %v532 = vadd.f32 %v266, %v531
  %v533 = vpop.f32.mrf.mxu0
  %v534 = vpop.f32.mrf.mxu0
  %v535 = vadd.f32 %v266, %v534
  %v536 = vpop.f32.mrf.mxu0
  %537 = vmatprep.mubr.bf16.mxu0 0
  %538 = vmatmul.mubr.bf16.gmra.mxu0 %v447
  %v539 = vpop.f32.mrf.mxu0
  %v540 = vadd.f32 %v266, %v539
  %v541 = vpop.f32.mrf.mxu0
  %v542 = vpop.f32.mrf.mxu0
  %v543 = vadd.f32 %v266, %v542
  %v544 = vpop.f32.mrf.mxu0
  %545 = vdwg.mxu0
  %v546 = vmax.f32 %v484, 0.0
  %v547 = vmax.f32 %v487, 0.0
  %v548 = vmax.f32 %v492, 0.0
  %v549 = vmax.f32 %v495, 0.0
  %v550 = vmax.f32 %v500, 0.0
  %v551 = vmax.f32 %v503, 0.0
  %v552 = vmax.f32 %v508, 0.0
  %v553 = vmax.f32 %v511, 0.0
  %v554 = vmax.f32 %v516, 0.0
  %v555 = vmax.f32 %v519, 0.0
  %v556 = vmax.f32 %v524, 0.0
  %v557 = vmax.f32 %v527, 0.0
  %v558 = vmax.f32 %v532, 0.0
  %v559 = vmax.f32 %v535, 0.0
  %v560 = vmax.f32 %v540, 0.0
  %v561 = vmax.f32 %v543, 0.0
  %v562 = vpack.c.bf16 %v547, %v546
  %v563 = vpack.c.bf16 %v549, %v548
  %v564 = vpack.c.bf16 %v551, %v550
  %v565 = vpack.c.bf16 %v553, %v552
  %v566 = vpack.c.bf16 %v555, %v554
  %v567 = vpack.c.bf16 %v557, %v556
  %v568 = vpack.c.bf16 %v559, %v558
  %v569 = vpack.c.bf16 %v561, %v560
  %v571 = vsel %vm116, %v562, 0
  %v574 = vsel %vm116, %v563, 0
  %v577 = vsel %vm116, %v564, 0
  %v580 = vsel %vm116, %v565, 0
  %v583 = vsel %vm116, %v566, 0
  %v586 = vsel %vm116, %v567, 0
  %v589 = vsel %vm116, %v568, 0
  %v592 = vsel %vm116, %v569, 0
  %594 = vmatprep.subr.bf16.mxu0 0
  %595 = vmatpush1.bf16.msra.mxu0 0
  %596 = vmatprep.subr.bf16.mxu0 0
  %597 = vmatpush1.bf16.msra.mxu0 0
  %598 = vmatprep.subr.bf16.mxu0 0
  %599 = vmatpush1.bf16.msra.mxu0 0
  %600 = vmatprep.subr.bf16.mxu0 0
  %601 = vmatpush1.bf16.msra.mxu0 0
  %602 = vmatprep.subr.bf16.mxu0 0
  %603 = vmatpush1.bf16.msra.mxu0 0
  %604 = vmatprep.subr.bf16.mxu0 0
  %605 = vmatpush1.bf16.msra.mxu0 0
  %606 = vmatprep.subr.bf16.mxu0 0
  %607 = vmatpush1.bf16.msra.mxu0 %v277
  %608 = vmatprep.subr.bf16.mxu0 0
  %609 = vmatpush1.bf16.msra.mxu0 %v276
  %610 = vmatprep.subr.bf16.mxu0 0
  %611 = vmatpush2.bf16.msra.mxu0 0
  %612 = vmatprep.subr.bf16.mxu0 0
  %613 = vmatpush2.bf16.msra.mxu0 0
  %614 = vmatprep.subr.bf16.mxu0 0
  %615 = vmatpush2.bf16.msra.mxu0 0
  %616 = vmatprep.subr.bf16.mxu0 0
  %617 = vmatpush2.bf16.msra.mxu0 0
  %618 = vmatprep.subr.bf16.mxu0 0
  %619 = vmatpush2.bf16.msra.mxu0 0
  %620 = vmatprep.subr.bf16.mxu0 0
  %621 = vmatpush2.bf16.msra.mxu0 0
  %622 = vmatprep.subr.bf16.mxu0 0
  %623 = vmatpush2.bf16.msra.mxu0 0
  %624 = vmatprep.subr.bf16.mxu0 0
  %625 = vmatpush2.bf16.msra.mxu0 0
  %626 = vmatprep.mubr.bf16.mxu0 0
  %627 = vmatmul.mubr.bf16.gmra.mxu0 %v571
  %v628 = vpop.f32.mrf.mxu0
  %v629 = vadd.f32 %v266, %v628
  %v630 = vpop.f32.mrf.mxu0
  %v631 = vpop.f32.mrf.mxu0
  %v632 = vadd.f32 %v266, %v631
  %v633 = vpop.f32.mrf.mxu0
  %634 = vmatprep.mubr.bf16.mxu0 0
  %635 = vmatmul.mubr.bf16.gmra.mxu0 %v574
  %v636 = vpop.f32.mrf.mxu0
  %v637 = vadd.f32 %v266, %v636
  %v638 = vpop.f32.mrf.mxu0
  %v639 = vpop.f32.mrf.mxu0
  %v640 = vadd.f32 %v266, %v639
  %v641 = vpop.f32.mrf.mxu0
  %642 = vmatprep.mubr.bf16.mxu0 0
  %643 = vmatmul.mubr.bf16.gmra.mxu0 %v577
  %v644 = vpop.f32.mrf.mxu0
  %v645 = vadd.f32 %v266, %v644
  %v646 = vpop.f32.mrf.mxu0
  %v647 = vpop.f32.mrf.mxu0
  %v648 = vadd.f32 %v266, %v647
  %v649 = vpop.f32.mrf.mxu0
  %650 = vmatprep.mubr.bf16.mxu0 0
  %651 = vmatmul.mubr.bf16.gmra.mxu0 %v580
  %v652 = vpop.f32.mrf.mxu0
  %v653 = vadd.f32 %v266, %v652
  %v654 = vpop.f32.mrf.mxu0
  %v655 = vpop.f32.mrf.mxu0
  %v656 = vadd.f32 %v266, %v655
  %v657 = vpop.f32.mrf.mxu0
  %658 = vmatprep.mubr.bf16.mxu0 0
  %659 = vmatmul.mubr.bf16.gmra.mxu0 %v583
  %v660 = vpop.f32.mrf.mxu0
  %v661 = vadd.f32 %v266, %v660
  %v662 = vpop.f32.mrf.mxu0
  %v663 = vpop.f32.mrf.mxu0
  %v664 = vadd.f32 %v266, %v663
  %v665 = vpop.f32.mrf.mxu0
  %666 = vmatprep.mubr.bf16.mxu0 0
  %667 = vmatmul.mubr.bf16.gmra.mxu0 %v586
  %v668 = vpop.f32.mrf.mxu0
  %v669 = vadd.f32 %v266, %v668
  %v670 = vpop.f32.mrf.mxu0
  %v671 = vpop.f32.mrf.mxu0
  %v672 = vadd.f32 %v266, %v671
  %v673 = vpop.f32.mrf.mxu0
  %674 = vmatprep.mubr.bf16.mxu0 0
  %675 = vmatmul.mubr.bf16.gmra.mxu0 %v589
  %v676 = vpop.f32.mrf.mxu0
  %v677 = vadd.f32 %v266, %v676
  %v678 = vpop.f32.mrf.mxu0
  %v679 = vpop.f32.mrf.mxu0
  %v680 = vadd.f32 %v266, %v679
  %v681 = vpop.f32.mrf.mxu0
  %682 = vmatprep.mubr.bf16.mxu0 0
  %683 = vmatmul.mubr.bf16.gmra.mxu0 %v592
  %v684 = vpop.f32.mrf.mxu0
  %v685 = vadd.f32 %v266, %v684
  %v686 = vpop.f32.mrf.mxu0
  %v687 = vpop.f32.mrf.mxu0
  %v688 = vadd.f32 %v266, %v687
  %v689 = vpop.f32.mrf.mxu0
  %690 = vdwg.mxu0
  %v691 = vmax.f32 %v629, 0.0
  %v692 = vmax.f32 %v632, 0.0
  %v693 = vmax.f32 %v637, 0.0
  %v694 = vmax.f32 %v640, 0.0
  %v695 = vmax.f32 %v645, 0.0
  %v696 = vmax.f32 %v648, 0.0
  %v697 = vmax.f32 %v653, 0.0
  %v698 = vmax.f32 %v656, 0.0
  %v699 = vmax.f32 %v661, 0.0
  %v700 = vmax.f32 %v664, 0.0
  %v701 = vmax.f32 %v669, 0.0
  %v702 = vmax.f32 %v672, 0.0
  %v703 = vmax.f32 %v677, 0.0
  %v704 = vmax.f32 %v680, 0.0
  %v705 = vmax.f32 %v685, 0.0
  %v706 = vmax.f32 %v688, 0.0
  %v707 = vpack.c.bf16 %v692, %v691
  %v708 = vpack.c.bf16 %v694, %v693
  %v709 = vpack.c.bf16 %v696, %v695
  %v710 = vpack.c.bf16 %v698, %v697
  %v711 = vpack.c.bf16 %v700, %v699
  %v712 = vpack.c.bf16 %v702, %v701
  %v713 = vpack.c.bf16 %v704, %v703
  %v714 = vpack.c.bf16 %v706, %v705
  %v716 = vsel %vm116, %v707, 0
  %v719 = vsel %vm116, %v708, 0
  %v722 = vsel %vm116, %v709, 0
  %v725 = vsel %vm116, %v710, 0
  %v728 = vsel %vm116, %v711, 0
  %v731 = vsel %vm116, %v712, 0
  %v734 = vsel %vm116, %v713, 0
  %v737 = vsel %vm116, %v714, 0
  %739 = vmatprep.subr.bf16.mxu0 0
  %740 = vmatpush1.bf16.msra.mxu0 0
  %741 = vmatprep.subr.bf16.mxu0 0
  %742 = vmatpush1.bf16.msra.mxu0 0
  %743 = vmatprep.subr.bf16.mxu0 0
  %744 = vmatpush1.bf16.msra.mxu0 0
  %745 = vmatprep.subr.bf16.mxu0 0
  %746 = vmatpush1.bf16.msra.mxu0 0
  %747 = vmatprep.subr.bf16.mxu0 0
  %748 = vmatpush1.bf16.msra.mxu0 0
  %749 = vmatprep.subr.bf16.mxu0 0
  %750 = vmatpush1.bf16.msra.mxu0 0
  %751 = vmatprep.subr.bf16.mxu0 0
  %752 = vmatpush1.bf16.msra.mxu0 %v277
  %753 = vmatprep.subr.bf16.mxu0 0
  %754 = vmatpush1.bf16.msra.mxu0 %v276
  %755 = vmatprep.subr.bf16.mxu0 0
  %756 = vmatpush2.bf16.msra.mxu0 0
  %757 = vmatprep.subr.bf16.mxu0 0
  %758 = vmatpush2.bf16.msra.mxu0 0
  %759 = vmatprep.subr.bf16.mxu0 0
  %760 = vmatpush2.bf16.msra.mxu0 0
  %761 = vmatprep.subr.bf16.mxu0 0
  %762 = vmatpush2.bf16.msra.mxu0 0
  %763 = vmatprep.subr.bf16.mxu0 0
  %764 = vmatpush2.bf16.msra.mxu0 0
  %765 = vmatprep.subr.bf16.mxu0 0
  %766 = vmatpush2.bf16.msra.mxu0 0
  %767 = vmatprep.subr.bf16.mxu0 0
  %768 = vmatpush2.bf16.msra.mxu0 0
  %769 = vmatprep.subr.bf16.mxu0 0
  %770 = vmatpush2.bf16.msra.mxu0 0
  %771 = vmatprep.mubr.bf16.mxu0 0
  %772 = vmatmul.mubr.bf16.gmra.mxu0 %v716
  %v773 = vpop.f32.mrf.mxu0
  %v774 = vadd.f32 %v266, %v773
  %v775 = vpop.f32.mrf.mxu0
  %v776 = vpop.f32.mrf.mxu0
  %v777 = vadd.f32 %v266, %v776
  %v778 = vpop.f32.mrf.mxu0
  %779 = vmatprep.mubr.bf16.mxu0 0
  %780 = vmatmul.mubr.bf16.gmra.mxu0 %v719
  %v781 = vpop.f32.mrf.mxu0
  %v782 = vadd.f32 %v266, %v781
  %v783 = vpop.f32.mrf.mxu0
  %v784 = vpop.f32.mrf.mxu0
  %v785 = vadd.f32 %v266, %v784
  %v786 = vpop.f32.mrf.mxu0
  %787 = vmatprep.mubr.bf16.mxu0 0
  %788 = vmatmul.mubr.bf16.gmra.mxu0 %v722
  %v789 = vpop.f32.mrf.mxu0
  %v790 = vadd.f32 %v266, %v789
  %v791 = vpop.f32.mrf.mxu0
  %v792 = vpop.f32.mrf.mxu0
  %v793 = vadd.f32 %v266, %v792
  %v794 = vpop.f32.mrf.mxu0
  %795 = vmatprep.mubr.bf16.mxu0 0
  %796 = vmatmul.mubr.bf16.gmra.mxu0 %v725
  %v797 = vpop.f32.mrf.mxu0
  %v798 = vadd.f32 %v266, %v797
  %v799 = vpop.f32.mrf.mxu0
  %v800 = vpop.f32.mrf.mxu0
  %v801 = vadd.f32 %v266, %v800
  %v802 = vpop.f32.mrf.mxu0
  %803 = vmatprep.mubr.bf16.mxu0 0
  %804 = vmatmul.mubr.bf16.gmra.mxu0 %v728
  %v805 = vpop.f32.mrf.mxu0
  %v806 = vadd.f32 %v266, %v805
  %v807 = vpop.f32.mrf.mxu0
  %v808 = vpop.f32.mrf.mxu0
  %v809 = vadd.f32 %v266, %v808
  %v810 = vpop.f32.mrf.mxu0
  %811 = vmatprep.mubr.bf16.mxu0 0
  %812 = vmatmul.mubr.bf16.gmra.mxu0 %v731
  %v813 = vpop.f32.mrf.mxu0
  %v814 = vadd.f32 %v266, %v813
  %v815 = vpop.f32.mrf.mxu0
  %v816 = vpop.f32.mrf.mxu0
  %v817 = vadd.f32 %v266, %v816
  %v818 = vpop.f32.mrf.mxu0
  %819 = vmatprep.mubr.bf16.mxu0 0
  %820 = vmatmul.mubr.bf16.gmra.mxu0 %v734
  %v821 = vpop.f32.mrf.mxu0
  %v822 = vadd.f32 %v266, %v821
  %v823 = vpop.f32.mrf.mxu0
  %v824 = vpop.f32.mrf.mxu0
  %v825 = vadd.f32 %v266, %v824
  %v826 = vpop.f32.mrf.mxu0
  %827 = vmatprep.mubr.bf16.mxu0 0
  %828 = vmatmul.mubr.bf16.gmra.mxu0 %v737
  %v829 = vpop.f32.mrf.mxu0
  %v830 = vadd.f32 %v266, %v829
  %v831 = vpop.f32.mrf.mxu0
  %v832 = vpop.f32.mrf.mxu0
  %v833 = vadd.f32 %v266, %v832
  %v834 = vpop.f32.mrf.mxu0
  %835 = vdwg.mxu0
  %v836 = vmax.f32 %v774, 0.0
  %v837 = vmax.f32 %v777, 0.0
  %v838 = vmax.f32 %v782, 0.0
  %v839 = vmax.f32 %v785, 0.0
  %v840 = vmax.f32 %v790, 0.0
  %v841 = vmax.f32 %v793, 0.0
  %v842 = vmax.f32 %v798, 0.0
  %v843 = vmax.f32 %v801, 0.0
  %v844 = vmax.f32 %v806, 0.0
  %v845 = vmax.f32 %v809, 0.0
  %v846 = vmax.f32 %v814, 0.0
  %v847 = vmax.f32 %v817, 0.0
  %v848 = vmax.f32 %v822, 0.0
  %v849 = vmax.f32 %v825, 0.0
  %v850 = vmax.f32 %v830, 0.0
  %v851 = vmax.f32 %v833, 0.0
  %v852 = vpack.c.bf16 %v837, %v836
  %v853 = vpack.c.bf16 %v839, %v838
  %v854 = vpack.c.bf16 %v841, %v840
  %v855 = vpack.c.bf16 %v843, %v842
  %v856 = vpack.c.bf16 %v845, %v844
  %v857 = vpack.c.bf16 %v847, %v846
  %v858 = vpack.c.bf16 %v849, %v848
  %v859 = vpack.c.bf16 %v851, %v850
  %v861 = vsel %vm116, %v852, 0
  %v864 = vsel %vm116, %v853, 0
  %v867 = vsel %vm116, %v854, 0
  %v870 = vsel %vm116, %v855, 0
  %v873 = vsel %vm116, %v856, 0
  %v876 = vsel %vm116, %v857, 0
  %v879 = vsel %vm116, %v858, 0
  %v882 = vsel %vm116, %v859, 0
  %884 = vmatprep.subr.bf16.mxu0 0
  %885 = vmatpush1.bf16.msra.mxu0 0
  %886 = vmatprep.subr.bf16.mxu0 0
  %887 = vmatpush1.bf16.msra.mxu0 0
  %888 = vmatprep.subr.bf16.mxu0 0
  %889 = vmatpush1.bf16.msra.mxu0 0
  %890 = vmatprep.subr.bf16.mxu0 0
  %891 = vmatpush1.bf16.msra.mxu0 0
  %892 = vmatprep.subr.bf16.mxu0 0
  %893 = vmatpush1.bf16.msra.mxu0 0
  %894 = vmatprep.subr.bf16.mxu0 0
  %895 = vmatpush1.bf16.msra.mxu0 0
  %896 = vmatprep.subr.bf16.mxu0 0
  %897 = vmatpush1.bf16.msra.mxu0 %v277
  %898 = vmatprep.subr.bf16.mxu0 0
  %899 = vmatpush1.bf16.msra.mxu0 %v276
  %900 = vmatprep.subr.bf16.mxu0 0
  %901 = vmatpush2.bf16.msra.mxu0 0
  %902 = vmatprep.subr.bf16.mxu0 0
  %903 = vmatpush2.bf16.msra.mxu0 0
  %904 = vmatprep.subr.bf16.mxu0 0
  %905 = vmatpush2.bf16.msra.mxu0 0
  %906 = vmatprep.subr.bf16.mxu0 0
  %907 = vmatpush2.bf16.msra.mxu0 0
  %908 = vmatprep.subr.bf16.mxu0 0
  %909 = vmatpush2.bf16.msra.mxu0 0
  %910 = vmatprep.subr.bf16.mxu0 0
  %911 = vmatpush2.bf16.msra.mxu0 0
  %912 = vmatprep.subr.bf16.mxu0 0
  %913 = vmatpush2.bf16.msra.mxu0 0
  %914 = vmatprep.subr.bf16.mxu0 0
  %915 = vmatpush2.bf16.msra.mxu0 0
  %916 = vmatprep.mubr.bf16.mxu0 0
  %917 = vmatmul.mubr.bf16.gmra.mxu0 %v861
  %v918 = vpop.f32.mrf.mxu0
  %v919 = vadd.f32 %v266, %v918
  %v920 = vpop.f32.mrf.mxu0
  %v921 = vpop.f32.mrf.mxu0
  %v922 = vadd.f32 %v266, %v921
  %v923 = vpop.f32.mrf.mxu0
  %924 = vmatprep.mubr.bf16.mxu0 0
  %925 = vmatmul.mubr.bf16.gmra.mxu0 %v864
  %v926 = vpop.f32.mrf.mxu0
  %v927 = vadd.f32 %v266, %v926
  %v928 = vpop.f32.mrf.mxu0
  %v929 = vpop.f32.mrf.mxu0
  %v930 = vadd.f32 %v266, %v929
  %v931 = vpop.f32.mrf.mxu0
  %932 = vmatprep.mubr.bf16.mxu0 0
  %933 = vmatmul.mubr.bf16.gmra.mxu0 %v867
  %v934 = vpop.f32.mrf.mxu0
  %v935 = vadd.f32 %v266, %v934
  %v936 = vpop.f32.mrf.mxu0
  %v937 = vpop.f32.mrf.mxu0
  %v938 = vadd.f32 %v266, %v937
  %v939 = vpop.f32.mrf.mxu0
  %940 = vmatprep.mubr.bf16.mxu0 0
  %941 = vmatmul.mubr.bf16.gmra.mxu0 %v870
  %v942 = vpop.f32.mrf.mxu0
  %v943 = vadd.f32 %v266, %v942
  %v944 = vpop.f32.mrf.mxu0
  %v945 = vpop.f32.mrf.mxu0
  %v946 = vadd.f32 %v266, %v945
  %v947 = vpop.f32.mrf.mxu0
  %948 = vmatprep.mubr.bf16.mxu0 0
  %949 = vmatmul.mubr.bf16.gmra.mxu0 %v873
  %v950 = vpop.f32.mrf.mxu0
  %v951 = vadd.f32 %v266, %v950
  %v952 = vpop.f32.mrf.mxu0
  %v953 = vpop.f32.mrf.mxu0
  %v954 = vadd.f32 %v266, %v953
  %v955 = vpop.f32.mrf.mxu0
  %956 = vmatprep.mubr.bf16.mxu0 0
  %957 = vmatmul.mubr.bf16.gmra.mxu0 %v876
  %v958 = vpop.f32.mrf.mxu0
  %v959 = vadd.f32 %v266, %v958
  %v960 = vpop.f32.mrf.mxu0
  %v961 = vpop.f32.mrf.mxu0
  %v962 = vadd.f32 %v266, %v961
  %v963 = vpop.f32.mrf.mxu0
  %964 = vmatprep.mubr.bf16.mxu0 0
  %965 = vmatmul.mubr.bf16.gmra.mxu0 %v879
  %v966 = vpop.f32.mrf.mxu0
  %v967 = vadd.f32 %v266, %v966
  %v968 = vpop.f32.mrf.mxu0
  %v969 = vpop.f32.mrf.mxu0
  %v970 = vadd.f32 %v266, %v969
  %v971 = vpop.f32.mrf.mxu0
  %972 = vmatprep.mubr.bf16.mxu0 0
  %973 = vmatmul.mubr.bf16.gmra.mxu0 %v882
  %v974 = vpop.f32.mrf.mxu0
  %v975 = vadd.f32 %v266, %v974
  %v976 = vpop.f32.mrf.mxu0
  %v977 = vpop.f32.mrf.mxu0
  %v978 = vadd.f32 %v266, %v977
  %v979 = vpop.f32.mrf.mxu0
  %980 = vdwg.mxu0
  %v981 = vmax.f32 %v919, 0.0
  %v982 = vmax.f32 %v922, 0.0
  %v983 = vmax.f32 %v927, 0.0
  %v984 = vmax.f32 %v930, 0.0
  %v985 = vmax.f32 %v935, 0.0
  %v986 = vmax.f32 %v938, 0.0
  %v987 = vmax.f32 %v943, 0.0
  %v988 = vmax.f32 %v946, 0.0
  %v989 = vmax.f32 %v951, 0.0
  %v990 = vmax.f32 %v954, 0.0
  %v991 = vmax.f32 %v959, 0.0
  %v992 = vmax.f32 %v962, 0.0
  %v993 = vmax.f32 %v967, 0.0
  %v994 = vmax.f32 %v970, 0.0
  %v995 = vmax.f32 %v975, 0.0
  %v996 = vmax.f32 %v978, 0.0
  %v997 = vpack.c.bf16 %v982, %v981
  %v998 = vpack.c.bf16 %v984, %v983
  %v999 = vpack.c.bf16 %v986, %v985
  %v1000 = vpack.c.bf16 %v988, %v987
  %v1001 = vpack.c.bf16 %v990, %v989
  %v1002 = vpack.c.bf16 %v992, %v991
  %v1003 = vpack.c.bf16 %v994, %v993
  %v1004 = vpack.c.bf16 %v996, %v995
  %v1006 = vsel %vm116, %v997, 0
  %v1009 = vsel %vm116, %v998, 0
  %v1012 = vsel %vm116, %v999, 0
  %v1015 = vsel %vm116, %v1000, 0
  %v1018 = vsel %vm116, %v1001, 0
  %v1021 = vsel %vm116, %v1002, 0
  %v1024 = vsel %vm116, %v1003, 0
  %v1027 = vsel %vm116, %v1004, 0
  %1029 = vmatprep.subr.bf16.mxu0 0
  %1030 = vmatpush1.bf16.msra.mxu0 0
  %1031 = vmatprep.subr.bf16.mxu0 0
  %1032 = vmatpush1.bf16.msra.mxu0 0
  %1033 = vmatprep.subr.bf16.mxu0 0
  %1034 = vmatpush1.bf16.msra.mxu0 0
  %1035 = vmatprep.subr.bf16.mxu0 0
  %1036 = vmatpush1.bf16.msra.mxu0 0
  %1037 = vmatprep.subr.bf16.mxu0 0
  %1038 = vmatpush1.bf16.msra.mxu0 0
  %1039 = vmatprep.subr.bf16.mxu0 0
  %1040 = vmatpush1.bf16.msra.mxu0 0
  %1041 = vmatprep.subr.bf16.mxu0 0
  %1042 = vmatpush1.bf16.msra.mxu0 %v277
  %1043 = vmatprep.subr.bf16.mxu0 0
  %1044 = vmatpush1.bf16.msra.mxu0 %v276
  %1045 = vmatprep.subr.bf16.mxu0 0
  %1046 = vmatpush2.bf16.msra.mxu0 0
  %1047 = vmatprep.subr.bf16.mxu0 0
  %1048 = vmatpush2.bf16.msra.mxu0 0
  %1049 = vmatprep.subr.bf16.mxu0 0
  %1050 = vmatpush2.bf16.msra.mxu0 0
  %1051 = vmatprep.subr.bf16.mxu0 0
  %1052 = vmatpush2.bf16.msra.mxu0 0
  %1053 = vmatprep.subr.bf16.mxu0 0
  %1054 = vmatpush2.bf16.msra.mxu0 0
  %1055 = vmatprep.subr.bf16.mxu0 0
  %1056 = vmatpush2.bf16.msra.mxu0 0
  %1057 = vmatprep.subr.bf16.mxu0 0
  %1058 = vmatpush2.bf16.msra.mxu0 0
  %1059 = vmatprep.subr.bf16.mxu0 0
  %1060 = vmatpush2.bf16.msra.mxu0 0
  %1061 = vmatprep.mubr.bf16.mxu0 0
  %1062 = vmatmul.mubr.bf16.gmra.mxu0 %v1006
  %v1063 = vpop.f32.mrf.mxu0
  %v1064 = vadd.f32 %v266, %v1063
  %v1065 = vpop.f32.mrf.mxu0
  %v1066 = vpop.f32.mrf.mxu0
  %v1067 = vadd.f32 %v266, %v1066
  %v1068 = vpop.f32.mrf.mxu0
  %1069 = vmatprep.mubr.bf16.mxu0 0
  %1070 = vmatmul.mubr.bf16.gmra.mxu0 %v1009
  %v1071 = vpop.f32.mrf.mxu0
  %v1072 = vadd.f32 %v266, %v1071
  %v1073 = vpop.f32.mrf.mxu0
  %v1074 = vpop.f32.mrf.mxu0
  %v1075 = vadd.f32 %v266, %v1074
  %v1076 = vpop.f32.mrf.mxu0
  %1077 = vmatprep.mubr.bf16.mxu0 0
  %1078 = vmatmul.mubr.bf16.gmra.mxu0 %v1012
  %v1079 = vpop.f32.mrf.mxu0
  %v1080 = vadd.f32 %v266, %v1079
  %v1081 = vpop.f32.mrf.mxu0
  %v1082 = vpop.f32.mrf.mxu0
  %v1083 = vadd.f32 %v266, %v1082
  %v1084 = vpop.f32.mrf.mxu0
  %1085 = vmatprep.mubr.bf16.mxu0 0
  %1086 = vmatmul.mubr.bf16.gmra.mxu0 %v1015
  %v1087 = vpop.f32.mrf.mxu0
  %v1088 = vadd.f32 %v266, %v1087
  %v1089 = vpop.f32.mrf.mxu0
  %v1090 = vpop.f32.mrf.mxu0
  %v1091 = vadd.f32 %v266, %v1090
  %v1092 = vpop.f32.mrf.mxu0
  %1093 = vmatprep.mubr.bf16.mxu0 0
  %1094 = vmatmul.mubr.bf16.gmra.mxu0 %v1018
  %v1095 = vpop.f32.mrf.mxu0
  %v1096 = vadd.f32 %v266, %v1095
  %v1097 = vpop.f32.mrf.mxu0
  %v1098 = vpop.f32.mrf.mxu0
  %v1099 = vadd.f32 %v266, %v1098
  %v1100 = vpop.f32.mrf.mxu0
  %1101 = vmatprep.mubr.bf16.mxu0 0
  %1102 = vmatmul.mubr.bf16.gmra.mxu0 %v1021
  %v1103 = vpop.f32.mrf.mxu0
  %v1104 = vadd.f32 %v266, %v1103
  %v1105 = vpop.f32.mrf.mxu0
  %v1106 = vpop.f32.mrf.mxu0
  %v1107 = vadd.f32 %v266, %v1106
  %v1108 = vpop.f32.mrf.mxu0
  %1109 = vmatprep.mubr.bf16.mxu0 0
  %1110 = vmatmul.mubr.bf16.gmra.mxu0 %v1024
  %v1111 = vpop.f32.mrf.mxu0
  %v1112 = vadd.f32 %v266, %v1111
  %v1113 = vpop.f32.mrf.mxu0
  %v1114 = vpop.f32.mrf.mxu0
  %v1115 = vadd.f32 %v266, %v1114
  %v1116 = vpop.f32.mrf.mxu0
  %1117 = vmatprep.mubr.bf16.mxu0 0
  %1118 = vmatmul.mubr.bf16.gmra.mxu0 %v1027
  %v1119 = vpop.f32.mrf.mxu0
  %v1120 = vadd.f32 %v266, %v1119
  %v1121 = vpop.f32.mrf.mxu0
  %v1122 = vpop.f32.mrf.mxu0
  %v1123 = vadd.f32 %v266, %v1122
  %v1124 = vpop.f32.mrf.mxu0
  %1125 = vdwg.mxu0
  %v1126 = vmax.f32 %v1064, 0.0
  %v1127 = vmax.f32 %v1067, 0.0
  %v1128 = vmax.f32 %v1072, 0.0
  %v1129 = vmax.f32 %v1075, 0.0
  %v1130 = vmax.f32 %v1080, 0.0
  %v1131 = vmax.f32 %v1083, 0.0
  %v1132 = vmax.f32 %v1088, 0.0
  %v1133 = vmax.f32 %v1091, 0.0
  %v1134 = vmax.f32 %v1096, 0.0
  %v1135 = vmax.f32 %v1099, 0.0
  %v1136 = vmax.f32 %v1104, 0.0
  %v1137 = vmax.f32 %v1107, 0.0
  %v1138 = vmax.f32 %v1112, 0.0
  %v1139 = vmax.f32 %v1115, 0.0
  %v1140 = vmax.f32 %v1120, 0.0
  %v1141 = vmax.f32 %v1123, 0.0
  %v1142 = vpack.c.bf16 %v1127, %v1126
  %v1143 = vpack.c.bf16 %v1129, %v1128
  %v1144 = vpack.c.bf16 %v1131, %v1130
  %v1145 = vpack.c.bf16 %v1133, %v1132
  %v1146 = vpack.c.bf16 %v1135, %v1134
  %v1147 = vpack.c.bf16 %v1137, %v1136
  %v1148 = vpack.c.bf16 %v1139, %v1138
  %v1149 = vpack.c.bf16 %v1141, %v1140
  %v1151 = vlaneseq
  %v1152 = vshrl.u32 %v1151, 7
  %v1153 = vsub.s32 0, %v1152
  %v1154 = vrot.slane %v41, %v1153
  %v1160 = vunpack.c.l.b16 %v35
  %v1161 = vunpack.c.l.b16 %v36
  %v1162 = vunpack.c.l.b16 %v37
  %v1163 = vunpack.c.l.b16 %v38
  %v1164 = vpack.c.b16 %v1161, %v1160
  %v1165 = vpack.c.b16 %v1163, %v1162
  %v1169 = vsel %vm116, %v1142, 0
  %v1172 = vsel %vm116, %v1143, 0
  %v1175 = vsel %vm116, %v1144, 0
  %v1178 = vsel %vm116, %v1145, 0
  %v1181 = vsel %vm116, %v1146, 0
  %v1184 = vsel %vm116, %v1147, 0
  %v1187 = vsel %vm116, %v1148, 0
  %v1190 = vsel %vm116, %v1149, 0
  %1192 = vmatprep.subr.bf16.mxu0 0
  %1193 = vmatpush1.bf16.msra.mxu0 0
  %1194 = vmatprep.subr.bf16.mxu0 0
  %1195 = vmatpush1.bf16.msra.mxu0 0
  %1196 = vmatprep.subr.bf16.mxu0 0
  %1197 = vmatpush1.bf16.msra.mxu0 0
  %1198 = vmatprep.subr.bf16.mxu0 0
  %1199 = vmatpush1.bf16.msra.mxu0 0
  %1200 = vmatprep.subr.bf16.mxu0 0
  %1201 = vmatpush1.bf16.msra.mxu0 0
  %1202 = vmatprep.subr.bf16.mxu0 0
  %1203 = vmatpush1.bf16.msra.mxu0 0
  %1204 = vmatprep.subr.bf16.mxu0 0
  %1205 = vmatpush1.bf16.msra.mxu0 %v1165
  %1206 = vmatprep.subr.bf16.mxu0 0
  %1207 = vmatpush1.bf16.msra.mxu0 %v1164
  %1208 = vmatprep.subr.bf16.mxu0 0
  %1209 = vmatpush2.bf16.msra.mxu0 0
  %1210 = vmatprep.subr.bf16.mxu0 0
  %1211 = vmatpush2.bf16.msra.mxu0 0
  %1212 = vmatprep.subr.bf16.mxu0 0
  %1213 = vmatpush2.bf16.msra.mxu0 0
  %1214 = vmatprep.subr.bf16.mxu0 0
  %1215 = vmatpush2.bf16.msra.mxu0 0
  %1216 = vmatprep.subr.bf16.mxu0 0
  %1217 = vmatpush2.bf16.msra.mxu0 0
  %1218 = vmatprep.subr.bf16.mxu0 0
  %1219 = vmatpush2.bf16.msra.mxu0 0
  %1220 = vmatprep.subr.bf16.mxu0 0
  %1221 = vmatpush2.bf16.msra.mxu0 0
  %1222 = vmatprep.subr.bf16.mxu0 0
  %1223 = vmatpush2.bf16.msra.mxu0 0
  %1224 = vmatprep.mubr.bf16.mxu0 0
  %1225 = vmatmul.mubr.bf16.gmra.mxu0 %v1169
  %v1226 = vpop.f32.mrf.mxu0
  %v1227 = vadd.f32 %v1154, %v1226
  %v1228 = vpop.f32.mrf.mxu0
  %v1229 = vpop.f32.mrf.mxu0
  %v1230 = vadd.f32 %v1154, %v1229
  %v1231 = vpop.f32.mrf.mxu0
  %1232 = vmatprep.mubr.bf16.mxu0 0
  %1233 = vmatmul.mubr.bf16.gmra.mxu0 %v1172
  %v1234 = vpop.f32.mrf.mxu0
  %v1235 = vadd.f32 %v1154, %v1234
  %v1236 = vpop.f32.mrf.mxu0
  %v1237 = vpop.f32.mrf.mxu0
  %v1238 = vadd.f32 %v1154, %v1237
  %v1239 = vpop.f32.mrf.mxu0
  %1240 = vmatprep.mubr.bf16.mxu0 0
  %1241 = vmatmul.mubr.bf16.gmra.mxu0 %v1175
  %v1242 = vpop.f32.mrf.mxu0
  %v1243 = vadd.f32 %v1154, %v1242
  %v1244 = vpop.f32.mrf.mxu0
  %v1245 = vpop.f32.mrf.mxu0
  %v1246 = vadd.f32 %v1154, %v1245
  %v1247 = vpop.f32.mrf.mxu0
  %1248 = vmatprep.mubr.bf16.mxu0 0
  %1249 = vmatmul.mubr.bf16.gmra.mxu0 %v1178
  %v1250 = vpop.f32.mrf.mxu0
  %v1251 = vadd.f32 %v1154, %v1250
  %v1252 = vpop.f32.mrf.mxu0
  %v1253 = vpop.f32.mrf.mxu0
  %v1254 = vadd.f32 %v1154, %v1253
  %v1255 = vpop.f32.mrf.mxu0
  %1256 = vmatprep.mubr.bf16.mxu0 0
  %1257 = vmatmul.mubr.bf16.gmra.mxu0 %v1181
  %v1258 = vpop.f32.mrf.mxu0
  %v1259 = vadd.f32 %v1154, %v1258
  %v1260 = vpop.f32.mrf.mxu0
  %v1261 = vpop.f32.mrf.mxu0
  %v1262 = vadd.f32 %v1154, %v1261
  %v1263 = vpop.f32.mrf.mxu0
  %1264 = vmatprep.mubr.bf16.mxu0 0
  %1265 = vmatmul.mubr.bf16.gmra.mxu0 %v1184
  %v1266 = vpop.f32.mrf.mxu0
  %v1267 = vadd.f32 %v1154, %v1266
  %v1268 = vpop.f32.mrf.mxu0
  %v1269 = vpop.f32.mrf.mxu0
  %v1270 = vadd.f32 %v1154, %v1269
  %v1271 = vpop.f32.mrf.mxu0
  %1272 = vmatprep.mubr.bf16.mxu0 0
  %1273 = vmatmul.mubr.bf16.gmra.mxu0 %v1187
  %v1274 = vpop.f32.mrf.mxu0
  %v1275 = vadd.f32 %v1154, %v1274
  %v1276 = vpop.f32.mrf.mxu0
  %v1277 = vpop.f32.mrf.mxu0
  %v1278 = vadd.f32 %v1154, %v1277
  %v1279 = vpop.f32.mrf.mxu0
  %1280 = vmatprep.mubr.bf16.mxu0 0
  %1281 = vmatmul.mubr.bf16.gmra.mxu0 %v1190
  %v1282 = vpop.f32.mrf.mxu0
  %v1283 = vadd.f32 %v1154, %v1282
  %v1284 = vpop.f32.mrf.mxu0
  %v1285 = vpop.f32.mrf.mxu0
  %v1286 = vadd.f32 %v1154, %v1285
  %v1287 = vpop.f32.mrf.mxu0
  %1288 = vdwg.mxu0
  %vm1289 = vcmask 130048
  %1290 = vst.msk [vmem:[%s7] sm:$0xff] %vm1289, %v1227
  %1291 = vst.msk [vmem:[%s7 + $0x8] sm:$0xff] %vm1289, %v1230
  %1292 = vst.msk [vmem:[%s7 + $0x10] sm:$0xff] %vm1289, %v1235
  %1293 = vst.msk [vmem:[%s7 + $0x18] sm:$0xff] %vm1289, %v1238
  %1294 = vst.msk [vmem:[%s7 + $0x20] sm:$0xff] %vm1289, %v1243
  %1295 = vst.msk [vmem:[%s7 + $0x28] sm:$0xff] %vm1289, %v1246
  %1296 = vst.msk [vmem:[%s7 + $0x30] sm:$0xff] %vm1289, %v1251
  %1297 = vst.msk [vmem:[%s7 + $0x38] sm:$0xff] %vm1289, %v1254
  %1298 = vst.msk [vmem:[%s7 + $0x40] sm:$0xff] %vm1289, %v1259
  %1299 = vst.msk [vmem:[%s7 + $0x48] sm:$0xff] %vm1289, %v1262
  %1300 = vst.msk [vmem:[%s7 + $0x50] sm:$0xff] %vm1289, %v1267
  %1301 = vst.msk [vmem:[%s7 + $0x58] sm:$0xff] %vm1289, %v1270
  %1302 = vst.msk [vmem:[%s7 + $0x60] sm:$0xff] %vm1289, %v1275
  %1303 = vst.msk [vmem:[%s7 + $0x68] sm:$0xff] %vm1289, %v1278
  %1304 = vst.msk [vmem:[%s7 + $0x70] sm:$0xff] %vm1289, %v1283
  %1305 = vst.msk [vmem:[%s7 + $0x78] sm:$0xff] %vm1289, %v1286
  // Predicated region
  $region30: #{tpu_custom_call.1} parent=0 // pred_check
    _
  $region31: #{tpu_custom_call.1} parent=0 // pred_check_branch
    %1307 = sbr.rel (0) target = $region33
  $region32: #{tpu_custom_call.1} parent=0 // pred_region
    _
  $region33: #{tpu_custom_call.1} parent=0 // pred_fallthru
    _
  // Predicated region
  $region34: #{tpu_custom_call.1} parent=0 // pred_check
    _
  $region35: #{tpu_custom_call.1} parent=0 // pred_check_branch
    %1309 = sbr.rel (0) target = $region37
  $region36: #{tpu_custom_call.1} parent=0 // pred_region
    _
  $region37: #{tpu_custom_call.1} parent=0 // pred_fallthru
    _

</llo_original>
